<compile_context>
chip_gen: v7x
topology: tpu7x:2x2x1
jax: 0.10.0
libtpu: 0.0.40
codegen_flags: <defaults>
</compile_context>

<pallas_src>
import functools

import jax
import jax.numpy as jnp
from jax import lax
from jax.experimental import pallas as pl
from jax.experimental.pallas import tpu as pltpu

# cfg.SOFTMAX in the original module; deterministic synthetic choice.
SOFTMAX = True
LANE = 128
_WORKING_SET_BYTES = 24 * 1024 * 1024     # target live VMEM working set
_VMEM_LIMIT_BYTES = 48 * 1024 * 1024      # < v7x 64 MiB physical


def _round_up(a, b):
    return ((a + b - 1) // b) * b


def _largest_divisor_leq(n, cap):
    cap = max(1, min(n, cap))
    for d in range(cap, 0, -1):
        if n % d == 0:
            return d
    return 1


def _partial_sq_kernel(x_ref, t_ref, out_ref, *, use_softmax, channels,
                       cast_to, mask_builder):
    """One block: channel softmax/sigmoid + squared error vs target, reduced
    to a single f32 partial sum written to a (1,1) SMEM output block.

    Per-channel slabs are x_ref[:, ci] (lane-dense (nb, tile_r, 128) or flat
    (nb, tile_s)); the channel reduction is unrolled elementwise VPU work
    (no cross-lane reduce until the final per-block sum).
    """

    def x_f32(ci):
        return x_ref[:, ci].astype(jnp.float32)

    def t_f32(ci):
        t = t_ref[:, ci]
        if cast_to is not None:
            t = t.astype(cast_to)          # torch: target.to(input.dtype)
        return t.astype(jnp.float32)

    # TODO(synk): for very large C, chunk this unroll (groups of ~8 channels)
    # to bound program size / live f32 slabs.
    if use_softmax:
        m = x_f32(0)
        for ci in range(1, channels):
            m = jnp.maximum(m, x_f32(ci))
        es = [jnp.exp(x_f32(ci) - m) for ci in range(channels)]
        den = es[0]
        for ci in range(1, channels):
            den = den + es[ci]
        # Exact reciprocal keeps the 1e-5 rtol vs the reference; approx=True +
        # one Newton step is an option for the bf16/VALU-bound v7x regime.
        inv = pl.reciprocal(den, approx=False)

        def diff(ci):                      # fused: probability never stored
            return es[ci] * inv - t_f32(ci)
    else:
        def diff(ci):
            return jax.nn.sigmoid(x_f32(ci)) - t_f32(ci)

    mask = None if mask_builder is None else mask_builder(pl.program_id(1))

    sq = None
    for ci in range(channels):
        d = diff(ci)
        if mask is not None:
            d = jnp.where(mask, d, 0.0)    # ragged-tile lanes/rows contribute 0
        dd = d * d
        sq = dd if sq is None else sq + dd

    out_ref[0, 0] = jnp.sum(sq)


def abnormal_mse_loss(inp, target, *, use_softmax=SOFTMAX,
                      working_set_bytes=_WORKING_SET_BYTES):
    """inp, target: NCHW arrays of identical shape. Returns a scalar loss."""
    assert inp.shape == target.shape and inp.ndim == 4
    n, c, h, w = inp.shape
    s = h * w
    total = n * c * h * w
    x_item = jnp.dtype(inp.dtype).itemsize
    t_item = jnp.dtype(target.dtype).itemsize
    cast_to = inp.dtype if target.dtype != inp.dtype else None

    if s % LANE == 0:
        # ---- lane-dense path: (N, C, S) -> (N, C, rows, 128), free reshape ----
        rows = s // LANE
        # f32 working set per 128-lane row of one batch:
        #   2 pipeline buffers x (x + t) blocks + (c + 3) live f32 slabs
        per_row = LANE * (2 * c * (x_item + t_item) + (c + 3) * 4)
        max_rows = max(1, working_set_bytes // per_row)
        if rows <= max_rows:
            tile_r, num_s_tiles = rows, 1
            nb = _largest_divisor_leq(
                n, max(1, max_rows // _round_up(max(rows, 8), 8)))
            mask_builder = None
        else:
            nb = 1
            tile_r = max(8, (max_rows // 8) * 8)
            # TODO(synk): for very large C even tile_r=8 can exceed the VMEM
            # budget; that regime needs channel-chunked multi-pass streaming.
            num_s_tiles = pl.cdiv(rows, tile_r)
            if num_s_tiles * tile_r != rows:
                def mask_builder(si, _tile_r=tile_r, _rows=rows):
                    row = si * _tile_r + lax.broadcasted_iota(
                        jnp.int32, (_tile_r, LANE), 0)
                    return row < _rows
            else:
                mask_builder = None

        x = inp.reshape(n, c, rows, LANE)
        t = target.reshape(n, c, rows, LANE)
        blk = (nb, c, tile_r, LANE)
        in_index_map = lambda gb, si: (gb, 0, si, 0)
    else:
        # ---- flat path (S % 128 != 0): (N, C, S), no pad, ragged lane tiles ----
        c_pad = _round_up(c, 8)
        # per 128-lane column, with (c + 3) live f32 slabs counted at 8-sublane
        # vreg granularity (conservative for nb == 1).
        per_col = LANE * (2 * c_pad * (x_item + t_item) + (c + 3) * 8 * 4)
        max_cols = max(1, working_set_bytes // per_col)
        s_cols = pl.cdiv(s, LANE)
        if s_cols <= max_cols:
            tile_s, num_s_tiles = s, 1
            nb = _largest_divisor_leq(n, max(1, max_cols // s_cols))
            mask_builder = None
        else:
            nb = 1
            tile_s = max_cols * LANE
            num_s_tiles = pl.cdiv(s, tile_s)
            if s % tile_s != 0:
                def mask_builder(si, _tile_s=tile_s, _s=s):
                    col = si * _tile_s + lax.broadcasted_iota(
                        jnp.int32, (1, _tile_s), 1)
                    return col < _s
            else:
                mask_builder = None
        # TODO(synk): for huge odd-sized spatial (nb == 1 here) a channel-on-
        # sublane variant (axis-1 reduce) would restore full vreg occupancy.

        x = inp.reshape(n, c, s)
        t = target.reshape(n, c, s)
        blk = (nb, c, tile_s)
        in_index_map = lambda gb, si: (gb, 0, si)

    num_groups = n // nb
    kernel = functools.partial(
        _partial_sq_kernel,
        use_softmax=use_softmax,
        channels=c,
        cast_to=cast_to,
        mask_builder=mask_builder,
    )

    partials = pl.pallas_call(
        kernel,
        out_shape=jax.ShapeDtypeStruct((num_groups, num_s_tiles), jnp.float32),
        grid_spec=pltpu.PrefetchScalarGridSpec(
            num_scalar_prefetch=0,
            grid=(num_groups, num_s_tiles),
            in_specs=[
                pl.BlockSpec(blk, in_index_map),
                pl.BlockSpec(blk, in_index_map),
            ],
            out_specs=pl.BlockSpec((1, 1), lambda gb, si: (gb, si),
                                   memory_space=pltpu.SMEM),
        ),
        # No carried state -> both axes parallel (megacore sharding on v7x).
        compiler_params=pltpu.CompilerParams(
            dimension_semantics=("parallel", "parallel"),
            vmem_limit_bytes=_VMEM_LIMIT_BYTES,
        ),
    )(x, t)

    loss = jnp.sum(partials) * (1.0 / float(total))
    return loss.astype(inp.dtype)


def _reference(inp, target, use_softmax=SOFTMAX):
    t = target.astype(inp.dtype)
    p = jax.nn.softmax(inp, axis=1) if use_softmax else jax.nn.sigmoid(inp)
    return jnp.mean((p - t) ** 2)


if __name__ == "__main__":
    key = jax.random.PRNGKey(0)
    k1, k2, k3, k4, k5, k6, k7, k8 = jax.random.split(key, 8)

    # 1) Lane-dense path (S % 128 == 0) with batch folding: block (2,4,2,128).
    x1 = jax.random.normal(k1, (2, 4, 16, 16), dtype=jnp.float32)
    t1 = jax.random.uniform(k2, (2, 4, 16, 16), dtype=jnp.float32)
    l1 = abnormal_mse_loss(x1, t1)
    jax.block_until_ready(l1)
    r1 = _reference(x1, t1)
    assert jnp.allclose(l1, r1, rtol=1e-5, atol=1e-6), (l1, r1)

    # 2) Flat path (S % 128 != 0), whole spatial extent per block, no mask.
    x2 = jax.random.normal(k3, (1, 4, 10, 10), dtype=jnp.float32)
    t2 = jax.random.uniform(k4, (1, 4, 10, 10), dtype=jnp.float32)
    l2 = abnormal_mse_loss(x2, t2)
    jax.block_until_ready(l2)
    r2 = _reference(x2, t2)
    assert jnp.allclose(l2, r2, rtol=1e-5, atol=1e-6), (l2, r2)

    # 3) Lane-dense path with forced spatial tiling + ragged-row in-kernel mask.
    x3 = jax.random.normal(k5, (1, 4, 20, 128), dtype=jnp.float32)
    t3 = jax.random.uniform(k6, (1, 4, 20, 128), dtype=jnp.float32)
    l3 = abnormal_mse_loss(x3, t3, working_set_bytes=96 * 1024)
    jax.block_until_ready(l3)
    r3 = _reference(x3, t3)
    assert jnp.allclose(l3, r3, rtol=1e-5, atol=1e-6), (l3, r3)

    # 4) Flat path with forced spatial tiling + ragged-lane in-kernel mask.
    x4 = jax.random.normal(k7, (1, 4, 18, 20), dtype=jnp.float32)
    t4 = jax.random.uniform(k8, (1, 4, 18, 20), dtype=jnp.float32)
    l4 = abnormal_mse_loss(x4, t4, working_set_bytes=100 * 1024)
    jax.block_until_ready(l4)
    r4 = _reference(x4, t4)
    assert jnp.allclose(l4, r4, rtol=1e-5, atol=1e-6), (l4, r4)

    print("KERNEL_OK")
</pallas_src>

<mosaic_0001>
module attributes {stable_mosaic.version = 11 : i64} {
  func.func @_partial_sq_kernel(%arg0: i32, %arg1: i32, %arg2: memref<2x4x2x128xf32, #tpu.memory_space<vmem>>, %arg3: memref<2x4x2x128xf32, #tpu.memory_space<vmem>>, %arg4: memref<1x1xf32, #tpu.memory_space<smem>>) attributes {dimension_semantics = [#tpu.dimension_semantics<parallel>, #tpu.dimension_semantics<parallel>], iteration_bounds = array<i64: 1, 1>, scalar_prefetch = 0 : i64, scratch_operands = 0 : i64, tpu.core_type = #tpu.core_type<tc>, window_params = [{transform_indices = @transform_0, window_bounds = array<i64: 2, 4, 2, 128>}, {transform_indices = @transform_1, window_bounds = array<i64: 2, 4, 2, 128>}, {transform_indices = @transform_2, window_bounds = array<i64: 1, 1>}]} {
    %c0 = arith.constant 0 : index
    %c0_0 = arith.constant 0 : index
    %c0_1 = arith.constant 0 : index
    %c0_2 = arith.constant 0 : index
    %0 = vector.load %arg2[%c0, %c0_0, %c0_1, %c0_2] : memref<2x4x2x128xf32, #tpu.memory_space<vmem>>, vector<2x1x2x128xf32>
    %1 = vector.shape_cast %0 : vector<2x1x2x128xf32> to vector<2x2x128xf32>
    %c0_3 = arith.constant 0 : index
    %c1 = arith.constant 1 : index
    %c0_4 = arith.constant 0 : index
    %c0_5 = arith.constant 0 : index
    %2 = vector.load %arg2[%c0_3, %c1, %c0_4, %c0_5] : memref<2x4x2x128xf32, #tpu.memory_space<vmem>>, vector<2x1x2x128xf32>
    %3 = vector.shape_cast %2 : vector<2x1x2x128xf32> to vector<2x2x128xf32>
    %4 = arith.maximumf %1, %3 : vector<2x2x128xf32>
    %c0_6 = arith.constant 0 : index
    %c2 = arith.constant 2 : index
    %c0_7 = arith.constant 0 : index
    %c0_8 = arith.constant 0 : index
    %5 = vector.load %arg2[%c0_6, %c2, %c0_7, %c0_8] : memref<2x4x2x128xf32, #tpu.memory_space<vmem>>, vector<2x1x2x128xf32>
    %6 = vector.shape_cast %5 : vector<2x1x2x128xf32> to vector<2x2x128xf32>
    %7 = arith.maximumf %4, %6 : vector<2x2x128xf32>
    %c0_9 = arith.constant 0 : index
    %c3 = arith.constant 3 : index
    %c0_10 = arith.constant 0 : index
    %c0_11 = arith.constant 0 : index
    %8 = vector.load %arg2[%c0_9, %c3, %c0_10, %c0_11] : memref<2x4x2x128xf32, #tpu.memory_space<vmem>>, vector<2x1x2x128xf32>
    %9 = vector.shape_cast %8 : vector<2x1x2x128xf32> to vector<2x2x128xf32>
    %10 = arith.maximumf %7, %9 : vector<2x2x128xf32>
    %c0_12 = arith.constant 0 : index
    %c0_13 = arith.constant 0 : index
    %c0_14 = arith.constant 0 : index
    %c0_15 = arith.constant 0 : index
    %11 = vector.load %arg2[%c0_12, %c0_13, %c0_14, %c0_15] : memref<2x4x2x128xf32, #tpu.memory_space<vmem>>, vector<2x1x2x128xf32>
    %12 = vector.shape_cast %11 : vector<2x1x2x128xf32> to vector<2x2x128xf32>
    %13 = arith.subf %12, %10 : vector<2x2x128xf32>
    %14 = math.exp %13 : vector<2x2x128xf32>
    %c0_16 = arith.constant 0 : index
    %c1_17 = arith.constant 1 : index
    %c0_18 = arith.constant 0 : index
    %c0_19 = arith.constant 0 : index
    %15 = vector.load %arg2[%c0_16, %c1_17, %c0_18, %c0_19] : memref<2x4x2x128xf32, #tpu.memory_space<vmem>>, vector<2x1x2x128xf32>
    %16 = vector.shape_cast %15 : vector<2x1x2x128xf32> to vector<2x2x128xf32>
    %17 = arith.subf %16, %10 : vector<2x2x128xf32>
    %18 = math.exp %17 : vector<2x2x128xf32>
    %c0_20 = arith.constant 0 : index
    %c2_21 = arith.constant 2 : index
    %c0_22 = arith.constant 0 : index
    %c0_23 = arith.constant 0 : index
    %19 = vector.load %arg2[%c0_20, %c2_21, %c0_22, %c0_23] : memref<2x4x2x128xf32, #tpu.memory_space<vmem>>, vector<2x1x2x128xf32>
    %20 = vector.shape_cast %19 : vector<2x1x2x128xf32> to vector<2x2x128xf32>
    %21 = arith.subf %20, %10 : vector<2x2x128xf32>
    %22 = math.exp %21 : vector<2x2x128xf32>
    %c0_24 = arith.constant 0 : index
    %c3_25 = arith.constant 3 : index
    %c0_26 = arith.constant 0 : index
    %c0_27 = arith.constant 0 : index
    %23 = vector.load %arg2[%c0_24, %c3_25, %c0_26, %c0_27] : memref<2x4x2x128xf32, #tpu.memory_space<vmem>>, vector<2x1x2x128xf32>
    %24 = vector.shape_cast %23 : vector<2x1x2x128xf32> to vector<2x2x128xf32>
    %25 = arith.subf %24, %10 : vector<2x2x128xf32>
    %26 = math.exp %25 : vector<2x2x128xf32>
    %27 = arith.addf %14, %18 : vector<2x2x128xf32>
    %28 = arith.addf %27, %22 : vector<2x2x128xf32>
    %29 = arith.addf %28, %26 : vector<2x2x128xf32>
    %30 = tpu.reciprocal %29 : vector<2x2x128xf32> -> vector<2x2x128xf32>
    %31 = arith.mulf %14, %30 : vector<2x2x128xf32>
    %c0_28 = arith.constant 0 : index
    %c0_29 = arith.constant 0 : index
    %c0_30 = arith.constant 0 : index
    %c0_31 = arith.constant 0 : index
    %32 = vector.load %arg3[%c0_28, %c0_29, %c0_30, %c0_31] : memref<2x4x2x128xf32, #tpu.memory_space<vmem>>, vector<2x1x2x128xf32>
    %33 = vector.shape_cast %32 : vector<2x1x2x128xf32> to vector<2x2x128xf32>
    %34 = arith.subf %31, %33 : vector<2x2x128xf32>
    %35 = arith.mulf %34, %34 : vector<2x2x128xf32>
    %36 = arith.mulf %18, %30 : vector<2x2x128xf32>
    %c0_32 = arith.constant 0 : index
    %c1_33 = arith.constant 1 : index
    %c0_34 = arith.constant 0 : index
    %c0_35 = arith.constant 0 : index
    %37 = vector.load %arg3[%c0_32, %c1_33, %c0_34, %c0_35] : memref<2x4x2x128xf32, #tpu.memory_space<vmem>>, vector<2x1x2x128xf32>
    %38 = vector.shape_cast %37 : vector<2x1x2x128xf32> to vector<2x2x128xf32>
    %39 = arith.subf %36, %38 : vector<2x2x128xf32>
    %40 = arith.mulf %39, %39 : vector<2x2x128xf32>
    %41 = arith.addf %35, %40 : vector<2x2x128xf32>
    %42 = arith.mulf %22, %30 : vector<2x2x128xf32>
    %c0_36 = arith.constant 0 : index
    %c2_37 = arith.constant 2 : index
    %c0_38 = arith.constant 0 : index
    %c0_39 = arith.constant 0 : index
    %43 = vector.load %arg3[%c0_36, %c2_37, %c0_38, %c0_39] : memref<2x4x2x128xf32, #tpu.memory_space<vmem>>, vector<2x1x2x128xf32>
    %44 = vector.shape_cast %43 : vector<2x1x2x128xf32> to vector<2x2x128xf32>
    %45 = arith.subf %42, %44 : vector<2x2x128xf32>
    %46 = arith.mulf %45, %45 : vector<2x2x128xf32>
    %47 = arith.addf %41, %46 : vector<2x2x128xf32>
    %48 = arith.mulf %26, %30 : vector<2x2x128xf32>
    %c0_40 = arith.constant 0 : index
    %c3_41 = arith.constant 3 : index
    %c0_42 = arith.constant 0 : index
    %c0_43 = arith.constant 0 : index
    %49 = vector.load %arg3[%c0_40, %c3_41, %c0_42, %c0_43] : memref<2x4x2x128xf32, #tpu.memory_space<vmem>>, vector<2x1x2x128xf32>
    %50 = vector.shape_cast %49 : vector<2x1x2x128xf32> to vector<2x2x128xf32>
    %51 = arith.subf %48, %50 : vector<2x2x128xf32>
    %52 = arith.mulf %51, %51 : vector<2x2x128xf32>
    %53 = arith.addf %47, %52 : vector<2x2x128xf32>
    %54 = vector.shape_cast %53 : vector<2x2x128xf32> to vector<1x2x2x128xf32>
    %cst = arith.constant dense<0.000000e+00> : vector<1xf32>
    %55 = vector.multi_reduction <add>, %54, %cst [1, 2, 3] : vector<1x2x2x128xf32> to vector<1xf32>
    %56 = vector.shape_cast %55 : vector<1xf32> to vector<1x1x1x1xf32>
    %57 = vector.extract %56[0, 0, 0, 0] : f32 from vector<1x1x1x1xf32>
    %c0_44 = arith.constant 0 : index
    %c0_45 = arith.constant 0 : index
    %58 = memref.load %arg4[%c0_44, %c0_45] : memref<1x1xf32, #tpu.memory_space<smem>>
    memref.store %57, %arg4[%c0_44, %c0_45] : memref<1x1xf32, #tpu.memory_space<smem>>
    return
  }
  func.func @transform_0(%arg0: i32, %arg1: i32) -> (i32, i32, i32, i32) {
    %c0_i32 = arith.constant 0 : i32
    %c0_i32_0 = arith.constant 0 : i32
    %c0_i32_1 = arith.constant 0 : i32
    return %arg0, %c0_i32, %arg1, %c0_i32_0 : i32, i32, i32, i32
  }
  func.func @transform_1(%arg0: i32, %arg1: i32) -> (i32, i32, i32, i32) {
    %c0_i32 = arith.constant 0 : i32
    %c0_i32_0 = arith.constant 0 : i32
    %c0_i32_1 = arith.constant 0 : i32
    return %arg0, %c0_i32, %arg1, %c0_i32_0 : i32, i32, i32, i32
  }
  func.func @transform_2(%arg0: i32, %arg1: i32) -> (i32, i32) {
    %c0_i32 = arith.constant 0 : i32
    return %arg0, %arg1 : i32, i32
  }
}

</mosaic_0001>

<llo_original>
// kernel: tpu_custom_call.1
$region0: #{tpu_custom_call.1}
  #allocation0 [shape = 'u32[]', space=smem, size = 0x4, offset = 0x4, fixed_abs, tag = 'smem constant byte address 0x4 - core index']
  #allocation1 [shape = 'u32[144,128]{1,0:T(1,128)}', space=vmem, size = 0x12000, scoped, tag = 'internal scratch']
  %s0 = inlined_call_operand.hbm [shape: f32[2,4,2,128], index: 0, kind: input, shape index: {}]
  %s1 = inlined_call_operand.hbm [shape: f32[2,4,2,128], index: 1, kind: input, shape index: {}]
  %s2 = inlined_call_operand.hbm [shape: f32[1,1], index: 2, kind: output, shape index: {}]
  %s3 = sld [smem:[#allocation0]]
  $region26: #{tpu_custom_call.1} parent=0
    _
  %s5 = ssub.s32 1, %s3
  %s6 = scalar_select 0, %s5, %s3
  $region1: #{tpu_custom_call.1} parent=0
    #allocation2 [shape = 'u8[8192]{0}', space=vmem, size = 0x2000, scoped, tag = 'input window, operand 0, single buffered']
    #allocation3 [shape = 's32[1]{0}', space=sflag, size = 0x4, scoped, tag = 'scoped memory for tpu_custom_call.1']
    #allocation4 [shape = 's32[1]{0}', space=sflag, size = 0x4, scoped, tag = 'scoped memory for tpu_custom_call.1']
    #allocation5 [shape = 'u8[8192]{0}', space=vmem, size = 0x2000, scoped, tag = 'input window, operand 1, single buffered']
    #allocation6 [shape = 's32[1]{0}', space=sflag, size = 0x4, scoped, tag = 'scoped memory for tpu_custom_call.1']
    #allocation7 [shape = 'u8[512]{0}', space=smem, size = 0x200, scoped, tag = 'output window, operand 0, single buffered']
    %7 = vsyncpa [#allocation3], 0
    %8 = vsyncpa [#allocation6], 0
    %9 = vsyncpa [#allocation4], 0
    // Predicated region
    $region2: #{tpu_custom_call.1} parent=1 // pred_check
      _
    $region3: #{tpu_custom_call.1} parent=1 // pred_check_branch
      %11 = sbr.rel (0) target = $region5
    $region4: #{tpu_custom_call.1} parent=1 // pred_region
      %s13 = ssub.s32 256, 256
      %14 = vsyncadd [#allocation3], %s13
      %s15 = sshll.u32 [#allocation2], 4
      %s16 = int_to_ptr.vmem [resolvable:$true] %s15
      %21 = dma.hbm_to_vmem [thread:$0]  %s0, 256, %s16, [#allocation3], 32, 32, 2
    $region5: #{tpu_custom_call.1} parent=1 // pred_fallthru
      _
    // Predicated region
    $region6: #{tpu_custom_call.1} parent=1 // pred_check
      _
    $region7: #{tpu_custom_call.1} parent=1 // pred_check_branch
      %23 = sbr.rel (0) target = $region9
    $region8: #{tpu_custom_call.1} parent=1 // pred_region
      %s25 = ssub.s32 256, 256
      %26 = vsyncadd [#allocation6], %s25
      %s27 = sshll.u32 [#allocation5], 4
      %s28 = int_to_ptr.vmem [resolvable:$true] %s27
      %33 = dma.hbm_to_vmem [thread:$0]  %s1, 256, %s28, [#allocation6], 32, 32, 2
    $region9: #{tpu_custom_call.1} parent=1 // pred_fallthru
      _
    // Predicated region
    $region10: #{tpu_custom_call.1} parent=1 // pred_check
      _
    $region11: #{tpu_custom_call.1} parent=1 // pred_check_branch
      %35 = sbr.rel (0) target = $region13
    $region12: #{tpu_custom_call.1} parent=1 // pred_region
      %36 = dma.done [#allocation3], 256
    $region13: #{tpu_custom_call.1} parent=1 // pred_fallthru
      _
    // Predicated region
    $region14: #{tpu_custom_call.1} parent=1 // pred_check
      _
    $region15: #{tpu_custom_call.1} parent=1 // pred_check_branch
      %38 = sbr.rel (0) target = $region17
    $region16: #{tpu_custom_call.1} parent=1 // pred_region
      %39 = dma.done [#allocation6], 256
    $region17: #{tpu_custom_call.1} parent=1 // pred_fallthru
      _
    %v40 = vld [vmem:[#allocation2] sm:$0x3]
    %v41 = vld [vmem:[#allocation2 + $0x8] sm:$0x3]
    %s42 = scalar_lea.vmem [#allocation2], 2
    %v43 = vld [vmem:[%s42] sm:$0x3]
    %v44 = vld [vmem:[%s42 + $0x8] sm:$0x3]
    %v45 = vmax.f32 %v40, %v43
    %v46 = vmax.f32 %v41, %v44
    %s47 = scalar_lea.vmem [#allocation2], 4
    %v48 = vld [vmem:[%s47] sm:$0x3]
    %v49 = vld [vmem:[%s47 + $0x8] sm:$0x3]
    %v50 = vmax.f32 %v45, %v48
    %v51 = vmax.f32 %v46, %v49
    %s52 = scalar_lea.vmem [#allocation2], 6
    %v53 = vld [vmem:[%s52] sm:$0x3]
    %v54 = vld [vmem:[%s52 + $0x8] sm:$0x3]
    %v55 = vmax.f32 %v50, %v53
    %v56 = vmax.f32 %v51, %v54
    %v57 = vsub.f32 %v40, %v55
    %v58 = vsub.f32 %v41, %v56
    %v59 = vmul.f32 %v57, 1.442695
    %v60 = vpow.pop %v59
    %v61 = vmul.f32 %v58, 1.442695
    %v62 = vpow.pop %v61
    %v63 = vsub.f32 %v43, %v55
    %v64 = vsub.f32 %v44, %v56
    %v65 = vmul.f32 %v63, 1.442695
    %v66 = vpow.pop %v65
    %v67 = vmul.f32 %v64, 1.442695
    %v68 = vpow.pop %v67
    %v69 = vsub.f32 %v48, %v55
    %v70 = vsub.f32 %v49, %v56
    %v71 = vmul.f32 %v69, 1.442695
    %v72 = vpow.pop %v71
    %v73 = vmul.f32 %v70, 1.442695
    %v74 = vpow.pop %v73
    %v75 = vsub.f32 %v53, %v55
    %v76 = vsub.f32 %v54, %v56
    %v77 = vmul.f32 %v75, 1.442695
    %v78 = vpow.pop %v77
    %v79 = vmul.f32 %v76, 1.442695
    %v80 = vpow.pop %v79
    %v81 = vadd.f32 %v60, %v66
    %v82 = vadd.f32 %v62, %v68
    %v83 = vadd.f32 %v81, %v72
    %v84 = vadd.f32 %v82, %v74
    %v85 = vadd.f32 %v83, %v78
    %v86 = vadd.f32 %v84, %v80
    %v87 = vrcp.pop %v85
    %v88 = vrcp.pop %v86
    %v89 = vmul.f32 %v60, %v87
    %v90 = vmul.f32 %v62, %v88
    %v91 = vld [vmem:[#allocation5] sm:$0x3]
    %v92 = vld [vmem:[#allocation5 + $0x8] sm:$0x3]
    %v93 = vsub.f32 %v89, %v91
    %v94 = vsub.f32 %v90, %v92
    %v95 = vmul.f32 %v93, %v93
    %v96 = vmul.f32 %v94, %v94
    %v97 = vmul.f32 %v66, %v87
    %v98 = vmul.f32 %v68, %v88
    %s99 = scalar_lea.vmem [#allocation5], 2
    %v100 = vld [vmem:[%s99] sm:$0x3]
    %v101 = vld [vmem:[%s99 + $0x8] sm:$0x3]
    %v102 = vsub.f32 %v97, %v100
    %v103 = vsub.f32 %v98, %v101
    %v104 = vmul.f32 %v102, %v102
    %v105 = vmul.f32 %v103, %v103
    %v106 = vadd.f32 %v95, %v104
    %v107 = vadd.f32 %v96, %v105
    %v108 = vmul.f32 %v72, %v87
    %v109 = vmul.f32 %v74, %v88
    %s110 = scalar_lea.vmem [#allocation5], 4
    %v111 = vld [vmem:[%s110] sm:$0x3]
    %v112 = vld [vmem:[%s110 + $0x8] sm:$0x3]
    %v113 = vsub.f32 %v108, %v111
    %v114 = vsub.f32 %v109, %v112
    %v115 = vmul.f32 %v113, %v113
    %v116 = vmul.f32 %v114, %v114
    %v117 = vadd.f32 %v106, %v115
    %v118 = vadd.f32 %v107, %v116
    %v119 = vmul.f32 %v78, %v87
    %v120 = vmul.f32 %v80, %v88
    %s121 = scalar_lea.vmem [#allocation5], 6
    %v122 = vld [vmem:[%s121] sm:$0x3]
    %v123 = vld [vmem:[%s121 + $0x8] sm:$0x3]
    %v124 = vsub.f32 %v119, %v122
    %v125 = vsub.f32 %v120, %v123
    %v126 = vmul.f32 %v124, %v124
    %v127 = vmul.f32 %v125, %v125
    %v128 = vadd.f32 %v117, %v126
    %v129 = vadd.f32 %v118, %v127
    %vm130 = vcmask 1041408
    %v131 = vsel %vm130, %v128, 0.0
    %v132 = vsel %vm130, %v129, 0.0
    %v133 = vadd.f32 %v131, %v132
    %134 = vadd.xlane.f32.xlu0 %v133
    %v135 = vpop.xlane.xlu0 %134
    %v136 = vrot.slane %v135, 4
    %v137 = vadd.f32 %v135, %v136
    %v138 = vrot.slane %v137, 2
    %v139 = vadd.f32 %v137, %v138
    %v140 = vrot.slane %v139, 1
    %v141 = vadd.f32 %v139, %v140
    %s142 = vtos %v141
    %s143 = scalar_lea.smem [#allocation7], 0
    %144 = sst [smem:[%s143]] %s142
    // Predicated region
    $region18: #{tpu_custom_call.1} parent=1 // pred_check
      _
    $region19: #{tpu_custom_call.1} parent=1 // pred_check_branch
      %146 = sbr.rel (0) target = $region21
    $region20: #{tpu_custom_call.1} parent=1 // pred_region
      %s148 = ssub.s32 16, 16
      %149 = vsyncadd [#allocation4], %s148
      %152 = dma.smem_to_hbm [#allocation7], 16, %s2, [#allocation4]
    $region21: #{tpu_custom_call.1} parent=1 // pred_fallthru
      _
    // Predicated region
    $region22: #{tpu_custom_call.1} parent=1 // pred_check
      _
    $region23: #{tpu_custom_call.1} parent=1 // pred_check_branch
      %154 = sbr.rel (0) target = $region25
    $region24: #{tpu_custom_call.1} parent=1 // pred_region
      %155 = dma.done [#allocation4], 16
    $region25: #{tpu_custom_call.1} parent=1 // pred_fallthru
      _
    %156 = sfence
    %157 = vsyncpa [#allocation3], 1
    %158 = vsyncpa [#allocation6], 1
    %159 = vsyncpa [#allocation4], 1

</llo_original>
